<compile_context>
chip_gen: v7x
topology: tpu7x:2x2x1
jax: 0.10.0
libtpu: 0.0.40
codegen_flags: <defaults>
</compile_context>

<pallas_src>
import numpy as np
import jax
import jax.numpy as jnp
from jax.experimental import pallas as pl
from jax.experimental.pallas import tpu as pltpu


def _round_up(x, n):
    return ((x + n - 1) // n) * n


def _cdiv(a, b):
    return -(-a // b)


def _num_tensorcores():
    # v7x has 2 TensorCores per chip; v5e/v6e have 1.  Heuristic + safe fallback.
    try:
        kind = jax.devices()[0].device_kind.lower()
    except Exception:
        return 1
    return 2 if "v7" in kind else 1


def _make_sigscale_kernel(m, d, siglen, tb, resident_scale):
    def kernel(x_ref, y_ref, o_ref):
        if resident_scale:
            # Whole scale array is resident in VMEM; slice this tile's rows.
            start = pl.multiple_of(pl.program_id(0) * tb, tb)
            y = y_ref[pl.ds(start, tb), :].astype(jnp.float32)      # (TB, d)
        else:
            y = y_ref[...].astype(jnp.float32)                      # (TB, d)
        x = x_ref[...].astype(jnp.float32)                          # (TB, siglen)
        rows = y.shape[0]

        # Level 1: multiplier is y itself.
        o_ref[:, 0:d] = (x[:, 0:d] * y).astype(o_ref.dtype)

        # Levels 2..m: M_k = kron(y, M_{k-1}) built entirely on the VPU with
        # lane broadcasts + lane concats.  kron(y, P)[b, c*p + r] = y[b,c]*P[b,r];
        # the level-k product y_{i1}..y_{ik} is symmetric in its digits, so this
        # matches iisignature's row-major level flattening.  The multiply is
        # fused per level so only M_{k-1} / M_k are live at once.
        prev = y
        off = d
        for k in range(2, m + 1):
            p = d ** (k - 1)
            size = d ** k
            y_rep = jnp.concatenate(
                [jnp.broadcast_to(y[:, c:c + 1], (rows, p)) for c in range(d)],
                axis=-1)                                            # (TB, d*p)
            cur = y_rep * jnp.concatenate([prev] * d, axis=-1)      # (TB, d**k)
            o_ref[:, off:off + size] = (x[:, off:off + size] * cur
                                        ).astype(o_ref.dtype)
            prev = cur
            off += size

    return kernel


def sigscale_layer(sigs, scale, m):
    """Pallas TPU equivalent of SigScaleLayer(m).forward(sigs, scale)."""
    squeeze = False
    if sigs.ndim == 1:                 # unbatched, like iisignature.sigscale
        sigs, scale = sigs[None], scale[None]
        squeeze = True
    B, siglen = sigs.shape
    d = scale.shape[-1]
    expected = sum(d ** k for k in range(1, m + 1))
    assert siglen == expected, (siglen, expected)

    x_itemsize = np.dtype(sigs.dtype).itemsize
    row_align = 8 * max(1, 4 // max(1, x_itemsize))   # f32: 8, bf16: 16, int8: 32

    # --- batch tile: ~2 MiB of x (lane-padded VMEM footprint) per tile, which
    # sits at the measured DMA roofline knee while leaving headroom for the
    # double-buffered x/out tiles + in-kernel temporaries on v7x's smaller VMEM.
    lane_pad = _round_up(siglen, 128)
    target_rows = max(row_align,
                      ((2 << 20) // (lane_pad * 4)) // row_align * row_align)
    tb = min(target_rows, _round_up(B, row_align))

    # v7x only: give both TensorCores work when each core's share is big
    # enough to be worth the ~0.35 us grid-step overhead.  Never forced on
    # single-TC v5e/v6e (their grid is a serial loop).
    ntc = _num_tensorcores()
    if ntc > 1 and _cdiv(B, tb) < ntc:
        per_core = _round_up(_cdiv(_round_up(B, row_align), ntc), row_align)
        if per_core * siglen * x_itemsize * 2 >= (1 << 20):
            tb = per_core

    grid = _cdiv(B, tb)
    b_grid = grid * tb

    # --- tiny `scale`: keep it resident in VMEM (single block, fetched once)
    # unless the batch is large enough that its lane-padded footprint matters;
    # then fall back to per-step (TB, d) blocks.
    resident_scale = (b_grid * 128 * 4) <= (2 << 20)
    if resident_scale:
        if b_grid > B:          # pad only the tiny scale array (never x)
            scale_in = jnp.concatenate(
                [scale, jnp.ones((b_grid - B, d), scale.dtype)], axis=0)
        else:
            scale_in = scale
        y_spec = pl.BlockSpec((b_grid, d), lambda i: (0, 0))
    else:
        scale_in = scale
        y_spec = pl.BlockSpec((tb, d), lambda i: (i, 0))

    kernel = _make_sigscale_kernel(m, d, siglen, tb, resident_scale)

    out = pl.pallas_call(
        kernel,
        out_shape=jax.ShapeDtypeStruct((B, siglen), jnp.float32),
        grid=(grid,),
        in_specs=[pl.BlockSpec((tb, siglen), lambda i: (i, 0)), y_spec],
        out_specs=pl.BlockSpec((tb, siglen), lambda i: (i, 0)),
        compiler_params=pltpu.CompilerParams(
            dimension_semantics=("parallel",)),
        cost_estimate=pl.CostEstimate(
            flops=int(3 * B * siglen),               # scale mul + kron build
            transcendentals=0,
            bytes_accessed=int(B * siglen * (x_itemsize + 4)
                               + b_grid * d * np.dtype(scale.dtype).itemsize)),
    )(sigs, scale_in)

    return out[0] if squeeze else out


def sigscale_reference(sigs, scale, m):
    """Pure-numpy reference (same math as iisignature.sigscale), float64."""
    sigs = np.asarray(sigs, np.float64)
    scale = np.asarray(scale, np.float64)
    B, siglen = sigs.shape
    d = scale.shape[-1]
    out = np.empty_like(sigs)
    for b in range(B):
        off = 0
        mult = np.ones(1, np.float64)
        for k in range(1, m + 1):
            mult = np.kron(mult, scale[b])        # level-k multiplier, (d**k,)
            size = d ** k
            out[b, off:off + size] = sigs[b, off:off + size] * mult
            off += size
    return out.astype(np.float32)


if __name__ == "__main__":
    m = 3                      # SigScaleLayer(m=3): truncation depth
    B, d = 2, 4                # batch of 2 signatures of 4-channel paths
    siglen = sum(d ** k for k in range(1, m + 1))   # 84

    key = jax.random.PRNGKey(0)
    k1, k2 = jax.random.split(key)
    sigs = 0.5 * jax.random.normal(k1, (B, siglen), dtype=jnp.float32)
    scale = 1.0 + 0.25 * jax.random.normal(k2, (B, d), dtype=jnp.float32)

    out = jax.block_until_ready(sigscale_layer(sigs, scale, m))

    ref = sigscale_reference(np.asarray(sigs), np.asarray(scale), m)
    assert out.shape == (B, siglen), out.shape
    assert out.dtype == jnp.float32, out.dtype
    assert np.allclose(np.asarray(out), ref, rtol=1e-4, atol=1e-6), (
        float(np.max(np.abs(np.asarray(out) - ref))))
    print("KERNEL_OK")
</pallas_src>

<mosaic_0001>
module attributes {stable_mosaic.version = 11 : i64} {
  func.func @kernel(%arg0: i32, %arg1: memref<8x84xf32, #tpu.memory_space<vmem>>, %arg2: memref<8x4xf32, #tpu.memory_space<vmem>>, %arg3: memref<8x84xf32, #tpu.memory_space<vmem>>) attributes {dimension_semantics = [#tpu.dimension_semantics<parallel>], iteration_bounds = array<i64: 1>, scalar_prefetch = 0 : i64, scratch_operands = 0 : i64, tpu.core_type = #tpu.core_type<tc>, window_params = [{transform_indices = @transform_0, window_bounds = array<i64: 8, 84>}, {pipeline_mode = #tpu.pipeline_mode<synchronous>, transform_indices = @transform_1, window_bounds = array<i64: 8, 4>}, {transform_indices = @transform_2, window_bounds = array<i64: 8, 84>}]} {
    %c8_i32 = arith.constant 8 : i32
    %0 = arith.muli %arg0, %c8_i32 : i32
    %1 = tpu.assume_multiple %0, 8 : i32
    %2 = arith.index_cast %1 : i32 to index
    %c0 = arith.constant 0 : index
    %3 = vector.load %arg2[%2, %c0] : memref<8x4xf32, #tpu.memory_space<vmem>>, vector<8x4xf32>
    %c0_0 = arith.constant 0 : index
    %c0_1 = arith.constant 0 : index
    %4 = vector.load %arg1[%c0_0, %c0_1] : memref<8x84xf32, #tpu.memory_space<vmem>>, vector<8x84xf32>
    %5 = vector.extract_strided_slice %4 {offsets = [0, 0], sizes = [8, 4], strides = [1, 1]} : vector<8x84xf32> to vector<8x4xf32>
    %6 = arith.mulf %5, %3 : vector<8x4xf32>
    %c0_2 = arith.constant 0 : index
    %c0_3 = arith.constant 0 : index
    %7 = vector.load %arg3[%c0_2, %c0_3] : memref<8x84xf32, #tpu.memory_space<vmem>>, vector<8x4xf32>
    tpu.vector_store %arg3[%c0_2, %c0_3], %6 {strides = array<i32>} : memref<8x84xf32, #tpu.memory_space<vmem>>, vector<8x4xf32>,
    %8 = vector.extract_strided_slice %3 {offsets = [0, 0], sizes = [8, 1], strides = [1, 1]} : vector<8x4xf32> to vector<8x1xf32>
    %9 = vector.shape_cast %8 : vector<8x1xf32> to vector<8x1xf32>
    %10 = vector.broadcast %9 : vector<8x1xf32> to vector<8x4xf32>
    %11 = vector.extract_strided_slice %3 {offsets = [0, 1], sizes = [8, 1], strides = [1, 1]} : vector<8x4xf32> to vector<8x1xf32>
    %12 = vector.shape_cast %11 : vector<8x1xf32> to vector<8x1xf32>
    %13 = vector.broadcast %12 : vector<8x1xf32> to vector<8x4xf32>
    %14 = vector.extract_strided_slice %3 {offsets = [0, 2], sizes = [8, 1], strides = [1, 1]} : vector<8x4xf32> to vector<8x1xf32>
    %15 = vector.shape_cast %14 : vector<8x1xf32> to vector<8x1xf32>
    %16 = vector.broadcast %15 : vector<8x1xf32> to vector<8x4xf32>
    %17 = vector.extract_strided_slice %3 {offsets = [0, 3], sizes = [8, 1], strides = [1, 1]} : vector<8x4xf32> to vector<8x1xf32>
    %18 = vector.shape_cast %17 : vector<8x1xf32> to vector<8x1xf32>
    %19 = vector.broadcast %18 : vector<8x1xf32> to vector<8x4xf32>
    %20 = tpu.concatenate %10, %13, %16, %19 in 1 : vector<8x4xf32>, vector<8x4xf32>, vector<8x4xf32>, vector<8x4xf32> -> vector<8x16xf32>
    %21 = tpu.concatenate %3, %3, %3, %3 in 1 : vector<8x4xf32>, vector<8x4xf32>, vector<8x4xf32>, vector<8x4xf32> -> vector<8x16xf32>
    %22 = arith.mulf %20, %21 : vector<8x16xf32>
    %23 = vector.extract_strided_slice %4 {offsets = [0, 4], sizes = [8, 16], strides = [1, 1]} : vector<8x84xf32> to vector<8x16xf32>
    %24 = arith.mulf %23, %22 : vector<8x16xf32>
    %c0_4 = arith.constant 0 : index
    %c4 = arith.constant 4 : index
    %25 = vector.load %arg3[%c0_4, %c4] : memref<8x84xf32, #tpu.memory_space<vmem>>, vector<8x16xf32>
    tpu.vector_store %arg3[%c0_4, %c4], %24 {strides = array<i32>} : memref<8x84xf32, #tpu.memory_space<vmem>>, vector<8x16xf32>,
    %26 = vector.extract_strided_slice %3 {offsets = [0, 0], sizes = [8, 1], strides = [1, 1]} : vector<8x4xf32> to vector<8x1xf32>
    %27 = vector.shape_cast %26 : vector<8x1xf32> to vector<8x1xf32>
    %28 = vector.broadcast %27 : vector<8x1xf32> to vector<8x16xf32>
    %29 = vector.extract_strided_slice %3 {offsets = [0, 1], sizes = [8, 1], strides = [1, 1]} : vector<8x4xf32> to vector<8x1xf32>
    %30 = vector.shape_cast %29 : vector<8x1xf32> to vector<8x1xf32>
    %31 = vector.broadcast %30 : vector<8x1xf32> to vector<8x16xf32>
    %32 = vector.extract_strided_slice %3 {offsets = [0, 2], sizes = [8, 1], strides = [1, 1]} : vector<8x4xf32> to vector<8x1xf32>
    %33 = vector.shape_cast %32 : vector<8x1xf32> to vector<8x1xf32>
    %34 = vector.broadcast %33 : vector<8x1xf32> to vector<8x16xf32>
    %35 = vector.extract_strided_slice %3 {offsets = [0, 3], sizes = [8, 1], strides = [1, 1]} : vector<8x4xf32> to vector<8x1xf32>
    %36 = vector.shape_cast %35 : vector<8x1xf32> to vector<8x1xf32>
    %37 = vector.broadcast %36 : vector<8x1xf32> to vector<8x16xf32>
    %38 = tpu.concatenate %28, %31, %34, %37 in 1 : vector<8x16xf32>, vector<8x16xf32>, vector<8x16xf32>, vector<8x16xf32> -> vector<8x64xf32>
    %39 = tpu.concatenate %22, %22, %22, %22 in 1 : vector<8x16xf32>, vector<8x16xf32>, vector<8x16xf32>, vector<8x16xf32> -> vector<8x64xf32>
    %40 = arith.mulf %38, %39 : vector<8x64xf32>
    %41 = vector.extract_strided_slice %4 {offsets = [0, 20], sizes = [8, 64], strides = [1, 1]} : vector<8x84xf32> to vector<8x64xf32>
    %42 = arith.mulf %41, %40 : vector<8x64xf32>
    %c0_5 = arith.constant 0 : index
    %c20 = arith.constant 20 : index
    %43 = vector.load %arg3[%c0_5, %c20] : memref<8x84xf32, #tpu.memory_space<vmem>>, vector<8x64xf32>
    tpu.vector_store %arg3[%c0_5, %c20], %42 {strides = array<i32>} : memref<8x84xf32, #tpu.memory_space<vmem>>, vector<8x64xf32>,
    return
  }
  func.func @transform_0(%arg0: i32) -> (i32, i32) {
    %c0_i32 = arith.constant 0 : i32
    %c0_i32_0 = arith.constant 0 : i32
    return %arg0, %c0_i32 : i32, i32
  }
  func.func @transform_1(%arg0: i32) -> (i32, i32) {
    %c0_i32 = arith.constant 0 : i32
    %c0_i32_0 = arith.constant 0 : i32
    %c0_i32_1 = arith.constant 0 : i32
    return %c0_i32, %c0_i32_0 : i32, i32
  }
  func.func @transform_2(%arg0: i32) -> (i32, i32) {
    %c0_i32 = arith.constant 0 : i32
    %c0_i32_0 = arith.constant 0 : i32
    return %arg0, %c0_i32 : i32, i32
  }
}

</mosaic_0001>

<llo_original>
// kernel: tpu_custom_call.1
$region0: #{tpu_custom_call.1}
  #allocation0 [shape = 'u32[]', space=smem, size = 0x4, offset = 0x4, fixed_abs, tag = 'smem constant byte address 0x4 - core index']
  #allocation1 [shape = 'u32[144,128]{1,0:T(1,128)}', space=vmem, size = 0x12000, scoped, tag = 'internal scratch']
  %s0 = inlined_call_operand.vmem [shape: f32[2,84], index: 0, kind: input, shape index: {}]
  %s1 = inlined_call_operand.vmem [shape: f32[8,4], index: 1, kind: input, shape index: {}]
  %s2 = inlined_call_operand.hbm [shape: f32[2,84], index: 2, kind: output, shape index: {}]
  %s3 = sld [smem:[#allocation0]]
  $region18: #{tpu_custom_call.1} parent=0
    _
  %s5 = ssub.s32 1, %s3
  %s6 = scalar_select 0, %s5, %s3
  $region1: #{tpu_custom_call.1} parent=0
    #allocation2 [shape = 'u8[4096]{0}', space=vmem, size = 0x1000, scoped, tag = 'output window, operand 0, single buffered']
    #allocation3 [shape = 's32[1]{0}', space=sflag, size = 0x4, scoped, tag = 'scoped memory for tpu_custom_call.1']
    %7 = vsyncpa [#allocation3], 0
    // Predicated region
    $region2: #{tpu_custom_call.1} parent=1 // pred_check
      _
    $region3: #{tpu_custom_call.1} parent=1 // pred_check_branch
      %9 = sbr.rel (0) target = $region5
    $region4: #{tpu_custom_call.1} parent=1 // pred_region
      _
    $region5: #{tpu_custom_call.1} parent=1 // pred_fallthru
      _
    // Predicated region
    $region6: #{tpu_custom_call.1} parent=1 // pred_check
      _
    $region7: #{tpu_custom_call.1} parent=1 // pred_check_branch
      %11 = sbr.rel (0) target = $region9
    $region8: #{tpu_custom_call.1} parent=1 // pred_region
      _
    $region9: #{tpu_custom_call.1} parent=1 // pred_fallthru
      _
    %s12 = smul.u32 0, 8
    %s13 = scalar_lea.vmem %s1, %s12
    %v14 = vld [vmem:[%s13] sm:$0xff]
    %v15 = vld [vmem:[%s0] sm:$0xff]
    %v16 = vmul.f32 %v15, %v14
    %vm17 = vcmask 31744
    %18 = vst.msk [vmem:[#allocation2] sm:$0xff] %vm17, %v16
    %20 = vset.pattern.permute.xlu0 0
    %21 = vperm.xlu0 %20, %v14
    %v22 = vpop.permute.xlu0 %21
    %24 = vset.pattern.permute.xlu0 1
    %25 = vperm.xlu0 %24, %v14
    %v26 = vpop.permute.xlu0 %25
    %28 = vset.pattern.permute.xlu0 2
    %29 = vperm.xlu0 %28, %v14
    %v30 = vpop.permute.xlu0 %29
    %32 = vset.pattern.permute.xlu0 3
    %33 = vperm.xlu0 %32, %v14
    %v34 = vpop.permute.xlu0 %33
    %v36 = vsel %vm17, %v22, %v26
    %vm37 = vcmask 64512
    %v38 = vsel %vm37, %v36, %v30
    %vm39 = vcmask 97280
    %v40 = vsel %vm39, %v38, %v34
    %41 = vrot.lane.b32.xlu0 %v14, 4
    %v42 = vpop.permute.xlu0 %41
    %44 = vrot.lane.b32.xlu0 %v14, 8
    %v45 = vpop.permute.xlu0 %44
    %47 = vrot.lane.b32.xlu0 %v14, 12
    %v48 = vpop.permute.xlu0 %47
    %v50 = vsel %vm17, %v14, %v42
    %v51 = vsel %vm37, %v50, %v45
    %v52 = vsel %vm39, %v51, %v48
    %v53 = vmul.f32 %v40, %v52
    %55 = vrot.lane.b32.xlu0 %v53, 4
    %v56 = vpop.permute.xlu0 %55
    %v58 = vmul.f32 %v15, %v56
    %vm59 = vcmask 162848
    %60 = vst.msk [vmem:[#allocation2] sm:$0xff] %vm59, %v58
    %vm61 = vcmask 130048
    %v62 = vsel %vm61, %v22, %v26
    %vm63 = vcmask 261120
    %v64 = vsel %vm63, %v62, %v30
    %vm65 = vcmask 392192
    %v66 = vsel %vm65, %v64, %v34
    %67 = vrot.lane.b32.xlu0 %v53, 16
    %v68 = vpop.permute.xlu0 %67
    %70 = vrot.lane.b32.xlu0 %v53, 32
    %v71 = vpop.permute.xlu0 %70
    %73 = vrot.lane.b32.xlu0 %v53, 48
    %v74 = vpop.permute.xlu0 %73
    %v76 = vsel %vm61, %v53, %v68
    %v77 = vsel %vm63, %v76, %v71
    %v78 = vsel %vm65, %v77, %v74
    %v79 = vmul.f32 %v66, %v78
    %81 = vrot.lane.b32.xlu0 %v79, 20
    %v82 = vpop.permute.xlu0 %81
    %v84 = vmul.f32 %v15, %v82
    %vm85 = vcmask 687264
    %86 = vst.msk [vmem:[#allocation2] sm:$0xff] %vm85, %v84
    // Predicated region
    $region10: #{tpu_custom_call.1} parent=1 // pred_check
      _
    $region11: #{tpu_custom_call.1} parent=1 // pred_check_branch
      %88 = sbr.rel (0) target = $region13
    $region12: #{tpu_custom_call.1} parent=1 // pred_region
      %s90 = ssub.s32 128, 32
      %91 = vsyncadd [#allocation3], %s90
      %s92 = sshll.u32 [#allocation2], 4
      %s93 = int_to_ptr.vmem [resolvable:$true] %s92
      %98 = dma.vmem_to_hbm [thread:$0]  %s93, 32, %s2, [#allocation3], 32, 32, 2
    $region13: #{tpu_custom_call.1} parent=1 // pred_fallthru
      _
    // Predicated region
    $region14: #{tpu_custom_call.1} parent=1 // pred_check
      _
    $region15: #{tpu_custom_call.1} parent=1 // pred_check_branch
      %100 = sbr.rel (0) target = $region17
    $region16: #{tpu_custom_call.1} parent=1 // pred_region
      %101 = dma.done [#allocation3], 128
    $region17: #{tpu_custom_call.1} parent=1 // pred_fallthru
      _
    %102 = vsyncpa [#allocation3], 1

</llo_original>
